<compile_context>
chip_gen: v5e
topology: v5e:2x2
jax: 0.10.0
libtpu: 0.0.40
codegen_flags: <defaults>
</compile_context>

<pallas_src>
import math
from functools import partial

import jax
import jax.numpy as jnp
from jax.experimental import pallas as pl
from jax.experimental.pallas import tpu as pltpu


def _round_up(x, m):
    return (x + m - 1) // m * m


def _pick_tm(M, row_tile):
    """Row tile: as large as row_tile, a multiple of 8, not above the row
    count, and split so the parallel grid has >= 2 steps when there is enough
    work (v7x has 2 TensorCores per chip)."""
    tm = min(row_tile, _round_up(M, 8))
    if pl.cdiv(M, tm) < 2 and M > 8:
        tm = _round_up(pl.cdiv(M, 2), 8)
    return max(8, tm)


# ----------------------------- Pallas kernel -----------------------------

def _patch_embed_kernel(p_ref, w_ref, b_ref, o_ref):
    # p_ref: (TM, K) patch rows (bf16 by default)
    # w_ref: (K, E)  projection weight (Conv2d weight reshaped/transposed)
    # b_ref: (1, E)  f32 bias
    # o_ref: (TM, E) output (f32 by default)
    acc = jnp.dot(p_ref[...], w_ref[...], preferred_element_type=jnp.float32)
    o_ref[...] = (acc + b_ref[...]).astype(o_ref.dtype)


def _patch_embed_matmul(patches, weight, bias2d, *, tm, out_dtype):
    """patches: (M, K), weight: (K, E), bias2d: (1, E) f32 -> (M, E) out_dtype.

    K and E are multiples of 128 (padded by the caller, lane-dense loads and
    stores).  M may be anything: the final row block is partial and Pallas
    masks its writeback.
    """
    M, K = patches.shape
    E = weight.shape[1]
    grid_m = pl.cdiv(M, tm)
    out_bytes = jax.dtypes.canonicalize_dtype(out_dtype).itemsize

    cost = pl.CostEstimate(
        flops=2 * M * K * E,
        transcendentals=0,
        bytes_accessed=(M * K * patches.dtype.itemsize
                        + K * E * weight.dtype.itemsize
                        + E * 4
                        + M * E * out_bytes),
    )

    # v5e's scoped-VMEM default is 16 MiB; only the tm>=1024 working set
    # (~11.5 MiB of tiles + internal scratch) needs explicit headroom.
    vmem_limit = 32 * 1024 * 1024 if tm >= 1024 else None

    # TODO(synk): if K*E ever outgrows VMEM (e.g. E >= 4096 or P = 32), add a
    # K grid axis marked 'arbitrary' with an f32 VMEM accumulator scratch.
    return pl.pallas_call(
        _patch_embed_kernel,
        out_shape=jax.ShapeDtypeStruct((M, E), out_dtype),
        grid_spec=pltpu.PrefetchScalarGridSpec(
            num_scalar_prefetch=0,
            grid=(grid_m,),
            in_specs=[
                pl.BlockSpec((tm, K), lambda i: (i, 0)),
                # Constant index_maps: weight/bias are DMA'd once and stay
                # resident across the whole grid.
                # TODO(synk): pipeline_mode=pl.Buffered(1) would also drop
                # their unused second VMEM buffer for extra headroom at
                # tm=1024.
                pl.BlockSpec((K, E), lambda i: (0, 0)),
                pl.BlockSpec((1, E), lambda i: (0, 0)),
            ],
            out_specs=pl.BlockSpec((tm, E), lambda i: (i, 0)),
        ),
        compiler_params=pltpu.CompilerParams(
            dimension_semantics=("parallel",),
            vmem_limit_bytes=vmem_limit,
        ),
        cost_estimate=cost,
    )(patches, weight, bias2d)


# ----------------------------- jitted forward -----------------------------

@partial(jax.jit, static_argnames=("patch_size", "embed_dim", "tm", "out_dtype"))
def _forward(x, w_mat, bias2d, *, patch_size, embed_dim, tm, out_dtype):
    B, C, T, H, W = x.shape
    P = patch_size
    Hp, Wp = H // P, W // P
    N = B * T
    num_patches = Hp * Wp
    K = C * P * P
    K_pad, E_pad = w_mat.shape
    M = N * num_patches

    # PyTorch Conv2d(stride=P, VALID) silently crops the remainder.
    if H != Hp * P or W != Wp * P:
        x = x[:, :, :, :Hp * P, :Wp * P]

    # rearrange 'b c t h w -> (b t) c h w' + im2col to (M, K) rows ordered
    # (c, kh, kw), matching the Conv2d weight layout.  Cast to the compute
    # dtype first so this single fused XLA copy moves half the bytes.
    # NOTE: kept in the wrapper — Mosaic input fusion does not absorb this
    # multi-axis transpose, and an in-kernel patchify needs lane-splitting
    # reshapes Mosaic does not lower reliably.
    # TODO(synk): fold patchify into the kernel once Mosaic supports the
    # relayout; it removes one write+read of this (M, K) buffer.
    x_bt = jnp.transpose(x.astype(w_mat.dtype), (0, 2, 1, 3, 4))
    x_bt = x_bt.reshape(N, C, Hp * P, Wp * P)
    patches = x_bt.reshape(N, C, Hp, P, Wp, P)
    patches = jnp.transpose(patches, (0, 2, 4, 1, 3, 5)).reshape(M, K)
    if K_pad != K:
        patches = jnp.pad(patches, ((0, 0), (0, K_pad - K)))

    out = _patch_embed_matmul(patches, w_mat, bias2d, tm=tm, out_dtype=out_dtype)
    if E_pad != embed_dim:
        out = out[:, :embed_dim]
    return out.reshape(N, num_patches, embed_dim)


# ----------------------------- Module wrapper -----------------------------

class VideoPatchEmbed:
    """JAX/Pallas port of the PyTorch VideoPatchEmbed module.

    __call__(x: (B, C, T, H, W)) -> (patches (B*T, Hp*Wp, embed_dim), T, Wp)
    """

    def __init__(self, patch_size=16, in_chans=3, embed_dim=768, key=None,
                 row_tile=512, compute_dtype=jnp.bfloat16,
                 out_dtype=jnp.float32):
        self.patch_size = (patch_size, patch_size)
        self.in_chans = in_chans
        self.embed_dim = embed_dim
        self.row_tile = row_tile
        self.out_dtype = out_dtype

        if key is None:
            key = jax.random.PRNGKey(0)
        k_w, k_b = jax.random.split(key)

        # Deterministic init mimicking nn.Conv2d defaults.
        fan_in = in_chans * patch_size * patch_size
        bound = math.sqrt(1.0 / fan_in)
        # PyTorch Conv2d weight layout: (embed_dim, in_chans, P, P)
        self.proj_weight = jax.random.uniform(
            k_w, (embed_dim, in_chans, patch_size, patch_size),
            minval=-bound, maxval=bound, dtype=jnp.float32)
        self.proj_bias = jax.random.uniform(
            k_b, (embed_dim,), minval=-bound, maxval=bound, dtype=jnp.float32)

        # One-time layout work (hoisted out of the forward path):
        # (E, C, P, P) -> (K, E), zero-pad K/E to lane-dense multiples of 128,
        # cast to the compute dtype (bias stays fp32, added post-accumulation).
        K = fan_in
        K_pad = _round_up(K, 128)
        E_pad = _round_up(embed_dim, 128)
        w_mat = self.proj_weight.reshape(embed_dim, K).T               # (K, E)
        w_mat = jnp.pad(w_mat, ((0, K_pad - K), (0, E_pad - embed_dim)))
        self._w_mat = w_mat.astype(compute_dtype)                      # (K_pad, E_pad)
        self._bias2d = jnp.pad(self.proj_bias,
                               (0, E_pad - embed_dim)).reshape(1, E_pad)

    def __call__(self, x):
        B, C, T, H, W = x.shape
        P = self.patch_size[0]
        assert C == self.in_chans
        Hp, Wp = H // P, W // P
        M = B * T * Hp * Wp
        tm = _pick_tm(M, self.row_tile)
        out = _forward(x, self._w_mat, self._bias2d,
                       patch_size=P, embed_dim=self.embed_dim, tm=tm,
                       out_dtype=self.out_dtype)
        # PyTorch forward returns (x, T, W_patch)
        return out, T, Wp


# ----------------------------- Reference (pure JAX) -----------------------------

def _reference_forward(module, x):
    B, C, T, H, W = x.shape
    P = module.patch_size[0]
    x_bt = jnp.transpose(x, (0, 2, 1, 3, 4)).reshape(B * T, C, H, W)
    y = jax.lax.conv_general_dilated(
        x_bt, module.proj_weight, window_strides=(P, P), padding="VALID",
        dimension_numbers=("NCHW", "OIHW", "NCHW"))
    y = y + module.proj_bias.reshape(1, -1, 1, 1)
    N, E, Hp, Wp = y.shape
    y = y.reshape(N, E, Hp * Wp).transpose(0, 2, 1)
    return y, T, Wp


# ----------------------------- Main -----------------------------

if __name__ == "__main__":
    key = jax.random.PRNGKey(0)
    k_x, k_params = jax.random.split(key)

    # Small shapes (B, C, T, H, W): M = B*T*Hp*Wp = 24 -> 2 grid steps with a
    # partial final block, exercising the pl.cdiv masked-writeback path.
    B, C, T, H, W = 2, 3, 3, 16, 16
    patch_size, embed_dim = 8, 32

    x = jax.random.normal(k_x, (B, C, T, H, W), dtype=jnp.float32)
    module = VideoPatchEmbed(patch_size=patch_size, in_chans=C,
                             embed_dim=embed_dim, key=k_params)

    out, t_out, w_patch = module(x)
    out = jax.block_until_ready(out)

    # Check against a pure-JAX fp32 conv reference (kernel uses bf16 operands
    # with fp32 accumulation, so tolerance is loosened accordingly).
    ref_out, ref_t, ref_wp = _reference_forward(module, x)
    assert out.shape == (B * T, (H // patch_size) * (W // patch_size), embed_dim)
    assert t_out == ref_t and w_patch == ref_wp
    assert jnp.allclose(out, ref_out, atol=3e-2, rtol=3e-2), (
        float(jnp.max(jnp.abs(out - ref_out))))
    print("KERNEL_OK")
</pallas_src>

<mosaic_0001>
module attributes {stable_mosaic.version = 11 : i64} {
  func.func @_patch_embed_kernel(%arg0: i32, %arg1: memref<16x256xbf16, #tpu.memory_space<vmem>>, %arg2: memref<256x128xbf16, #tpu.memory_space<vmem>>, %arg3: memref<1x128xf32, #tpu.memory_space<vmem>>, %arg4: memref<16x128xf32, #tpu.memory_space<vmem>>) attributes {dimension_semantics = [#tpu.dimension_semantics<parallel>], iteration_bounds = array<i64: 2>, scalar_prefetch = 0 : i64, scratch_operands = 0 : i64, tpu.core_type = #tpu.core_type<tc>, window_params = [{transform_indices = @transform_0, window_bounds = array<i64: 16, 256>}, {pipeline_mode = #tpu.pipeline_mode<synchronous>, transform_indices = @transform_1, window_bounds = array<i64: 256, 128>}, {pipeline_mode = #tpu.pipeline_mode<synchronous>, transform_indices = @transform_2, window_bounds = array<i64: 1, 128>}, {transform_indices = @transform_3, window_bounds = array<i64: 16, 128>}]} {
    %c0 = arith.constant 0 : index
    %c0_0 = arith.constant 0 : index
    %0 = vector.load %arg1[%c0, %c0_0] : memref<16x256xbf16, #tpu.memory_space<vmem>>, vector<16x256xbf16>
    %c0_1 = arith.constant 0 : index
    %c0_2 = arith.constant 0 : index
    %1 = vector.load %arg2[%c0_1, %c0_2] : memref<256x128xbf16, #tpu.memory_space<vmem>>, vector<256x128xbf16>
    %cst = arith.constant dense<0.000000e+00> : vector<16x128xf32>
    %2 = tpu.matmul %0, %1, %cst {dimension_numbers = #tpu.dot_dimension_numbers<[1], [0], [0], [1], [0, 0, 1, 1], [], []>} : vector<16x256xbf16>, vector<256x128xbf16>, vector<16x128xf32> -> vector<16x128xf32>
    %c0_3 = arith.constant 0 : index
    %c0_4 = arith.constant 0 : index
    %3 = vector.load %arg3[%c0_3, %c0_4] : memref<1x128xf32, #tpu.memory_space<vmem>>, vector<1x128xf32>
    %4 = vector.broadcast %3 : vector<1x128xf32> to vector<16x128xf32>
    %5 = arith.addf %2, %4 : vector<16x128xf32>
    %c0_5 = arith.constant 0 : index
    %c0_6 = arith.constant 0 : index
    %6 = vector.load %arg4[%c0_5, %c0_6] : memref<16x128xf32, #tpu.memory_space<vmem>>, vector<16x128xf32>
    tpu.vector_store %arg4[%c0_5, %c0_6], %5 {strides = array<i32>} : memref<16x128xf32, #tpu.memory_space<vmem>>, vector<16x128xf32>,
    return
  }
  func.func @transform_0(%arg0: i32) -> (i32, i32) {
    %c0_i32 = arith.constant 0 : i32
    %c0_i32_0 = arith.constant 0 : i32
    return %arg0, %c0_i32 : i32, i32
  }
  func.func @transform_1(%arg0: i32) -> (i32, i32) {
    %c0_i32 = arith.constant 0 : i32
    %c0_i32_0 = arith.constant 0 : i32
    %c0_i32_1 = arith.constant 0 : i32
    return %c0_i32, %c0_i32_0 : i32, i32
  }
  func.func @transform_2(%arg0: i32) -> (i32, i32) {
    %c0_i32 = arith.constant 0 : i32
    %c0_i32_0 = arith.constant 0 : i32
    %c0_i32_1 = arith.constant 0 : i32
    return %c0_i32, %c0_i32_0 : i32, i32
  }
  func.func @transform_3(%arg0: i32) -> (i32, i32) {
    %c0_i32 = arith.constant 0 : i32
    %c0_i32_0 = arith.constant 0 : i32
    return %arg0, %c0_i32 : i32, i32
  }
}

</mosaic_0001>

<llo_original>
// kernel: _forward.1
$region0: #{_forward.1}
  #allocation0 [shape = 'u32[]', space=smem, size = 0x4, offset = 0x4, fixed_abs, tag = 'smem constant byte address 0x4 - core index']
  #allocation1 [shape = 'u32[72,128]{1,0:T(1,128)}', space=vmem, size = 0x9000, scoped, tag = 'internal scratch']
  %s0 = inlined_call_operand.vmem [shape: bf16[24,256], index: 0, kind: input, shape index: {}]
  %s1 = inlined_call_operand.vmem [shape: bf16[256,128], index: 1, kind: input, shape index: {}]
  %s2 = inlined_call_operand.vmem [shape: f32[1,128], index: 2, kind: input, shape index: {}]
  %s3 = inlined_call_operand.hbm [shape: f32[24,128], index: 3, kind: output, shape index: {}]
  %s4 = sld [smem:[#allocation0]]
  $region45: #{_forward.1} parent=0
    _
  %s6 = ssub.s32 1, %s4
  %s7 = scalar_select 0, %s6, %s4
  $region1: #{_forward.1} parent=0
    #allocation2 [shape = 'u8[16384]{0}', space=vmem, size = 0x4000, scoped, tag = 'output window, operand 0']
    #allocation3 [shape = 's32[2]{0}', space=sflag, size = 0x8, scoped, tag = 'scoped memory for _forward.1']
    %8 = vsyncpa [#allocation3], 0
    %s9 = scalar_lea.sflag [#allocation3], 1
    %10 = vsyncpa %s9, 0
    loop: start=0, step=1, limit=4
    $region2: #{_forward.1} parent=1 // loop_pre_header
      _
    $region3: #{_forward.1} parent=1 // loop_header
      %s12 = sphi 0, %s16
      %p13 = scmp.ge.s32.totalorder %s12, 4
      %s22 = sphi 0, %s24
      %s25 = sphi 0, %s22
      %s26 = sphi 0, %s25
      %s42 = sphi 0, %s26
      %s46 = sphi 0, %s46
      %s48 = sphi 0, %s46
      %s49 = sphi 0, %s48
      %s63 = sphi 0, %s49
      %s67 = sphi 0, %s67
      %s69 = sphi 0, %s67
      %s70 = sphi 0, %s69
      %s84 = sphi 0, %s70
      %s90 = sphi 0, %s92
      %s93 = sphi 0, %s90
      %s94 = sphi 0, %s93
      %s110 = sphi 0, %s94
    $region4: #{_forward.1} parent=1 // loop_header_branch
      %15 = sbr.rel (%p13) target = $region8
    $region5: #{_forward.1} parent=1 // loop_body
      %s17 = ssub.s32 %s12, 1
      %s18 = ssub.s32 %s12, 2
      %s19 = sadd.s32 %s12, 1
      %s20 = ssub.s32 %s12, %s19
      %p21 = scmp.eq.s32.totalorder %s20, 0
      %s23 = sadd.s32 %s22, 1
      %s24 = scalar_select %p21, %s22, %s23
      %p27 = pneg %p21
      %p28 = scmp.eq.s32.totalorder %s12, 1
      %p29 = por %p27, %p28
      %p30 = scmp.ne.s32.totalorder %s22, %s25
      %p31 = scmp.eq.s32.totalorder %s12, 0
      %p32 = por %p30, %p31
      %p33 = scmp.ne.s32.totalorder %s22, %s25
      %p34 = scmp.eq.s32.totalorder %s17, 1
      %p35 = por %p33, %p34
      %p36 = scmp.ne.s32.totalorder %s25, %s26
      %p37 = scmp.eq.s32.totalorder %s17, 0
      %p38 = por %p36, %p37
      %p39 = scmp.ne.s32.totalorder %s25, %s26
      %p40 = scmp.eq.s32.totalorder %s18, 1
      %p41 = por %p39, %p40
      %p43 = scmp.ne.s32.totalorder %s26, %s42
      %p44 = scmp.eq.s32.totalorder %s18, 0
      %p45 = por %p43, %p44
      %s47 = sadd.s32 %s46, 1
      %p50 = scmp.eq.s32.totalorder %s12, 1
      %p51 = scmp.ne.s32.totalorder %s46, %s48
      %p52 = scmp.eq.s32.totalorder %s12, 0
      %p53 = por %p51, %p52
      %p54 = scmp.ne.s32.totalorder %s46, %s48
      %p55 = scmp.eq.s32.totalorder %s17, 1
      %p56 = por %p54, %p55
      %p57 = scmp.ne.s32.totalorder %s48, %s49
      %p58 = scmp.eq.s32.totalorder %s17, 0
      %p59 = por %p57, %p58
      %p60 = scmp.ne.s32.totalorder %s48, %s49
      %p61 = scmp.eq.s32.totalorder %s18, 1
      %p62 = por %p60, %p61
      %p64 = scmp.ne.s32.totalorder %s49, %s63
      %p65 = scmp.eq.s32.totalorder %s18, 0
      %p66 = por %p64, %p65
      %s68 = sadd.s32 %s67, 1
      %p71 = scmp.eq.s32.totalorder %s12, 1
      %p72 = scmp.ne.s32.totalorder %s67, %s69
      %p73 = scmp.eq.s32.totalorder %s12, 0
      %p74 = por %p72, %p73
      %p75 = scmp.ne.s32.totalorder %s67, %s69
      %p76 = scmp.eq.s32.totalorder %s17, 1
      %p77 = por %p75, %p76
      %p78 = scmp.ne.s32.totalorder %s69, %s70
      %p79 = scmp.eq.s32.totalorder %s17, 0
      %p80 = por %p78, %p79
      %p81 = scmp.ne.s32.totalorder %s69, %s70
      %p82 = scmp.eq.s32.totalorder %s18, 1
      %p83 = por %p81, %p82
      %p85 = scmp.ne.s32.totalorder %s70, %s84
      %p86 = scmp.eq.s32.totalorder %s18, 0
      %p87 = por %p85, %p86
      %s88 = ssub.s32 %s12, %s19
      %p89 = scmp.eq.s32.totalorder %s88, 0
      %s91 = sadd.s32 %s90, 1
      %s92 = scalar_select %p89, %s90, %s91
      %p95 = pneg %p89
      %p96 = scmp.eq.s32.totalorder %s12, 1
      %p97 = por %p95, %p96
      %p98 = scmp.ne.s32.totalorder %s90, %s93
      %p99 = scmp.eq.s32.totalorder %s12, 0
      %p100 = por %p98, %p99
      %p101 = scmp.ne.s32.totalorder %s90, %s93
      %p102 = scmp.eq.s32.totalorder %s17, 1
      %p103 = por %p101, %p102
      %p104 = scmp.ne.s32.totalorder %s93, %s94
      %p105 = scmp.eq.s32.totalorder %s17, 0
      %p106 = por %p104, %p105
      %p107 = scmp.ne.s32.totalorder %s93, %s94
      %p108 = scmp.eq.s32.totalorder %s18, 1
      %p109 = por %p107, %p108
      %p111 = scmp.ne.s32.totalorder %s94, %s110
      %p112 = scmp.eq.s32.totalorder %s18, 0
      %p113 = por %p111, %p112
      %p114 = scmp.le.s32.totalorder 1, %s12
      %p115 = scmp.lt.s32.totalorder %s12, 3
      %p116 = pnand %p114, %p115
      %p117 = pneg %p116
      // Predicated region
      $region9: #{_forward.1} parent=5 // pred_check
        _
      $region10: #{_forward.1} parent=5 // pred_check_branch
        %119 = sbr.rel (%p116) target = $region12
      $region11: #{_forward.1} parent=5 // pred_region
        %s120 = ssub.s32 %s12, 1
        // Predicated region
        $region13: #{_forward.1} parent=11 // pred_check
          %p121 = pneg %p59
        $region14: #{_forward.1} parent=11 // pred_check_branch
          %123 = sbr.rel (%p121) target = $region16
        $region15: #{_forward.1} parent=11 // pred_region
          _
        $region16: #{_forward.1} parent=11 // pred_fallthru
          _
        // Predicated region
        $region17: #{_forward.1} parent=11 // pred_check
          %p124 = pneg %p80
        $region18: #{_forward.1} parent=11 // pred_check_branch
          %126 = sbr.rel (%p124) target = $region20
        $region19: #{_forward.1} parent=11 // pred_region
          _
        $region20: #{_forward.1} parent=11 // pred_fallthru
          _
      $region12: #{_forward.1} parent=5 // pred_fallthru
        _
      %p127 = scmp.lt.s32.totalorder %s12, 2
      // Predicated region
      $region21: #{_forward.1} parent=5 // pred_check
        %p128 = pneg %p127
      $region22: #{_forward.1} parent=5 // pred_check_branch
        %130 = sbr.rel (%p128) target = $region24
      $region23: #{_forward.1} parent=5 // pred_region
        // Predicated region
        $region25: #{_forward.1} parent=23 // pred_check
          %p131 = pneg %p32
        $region26: #{_forward.1} parent=23 // pred_check_branch
          %133 = sbr.rel (%p131) target = $region28
        $region27: #{_forward.1} parent=23 // pred_region
          %s134 = smul.u32 2, %s12
          %s135 = ssub.s32 3, %s134
          %p136 = scmp.lt.s32.totalorder %s135, 2
          %s137 = scalar_select %p136, %s135, 2
          %s138 = smul.u32 4, %s137
          %s139 = smul.u32 %s138, 2
          %p140 = scmp.lt.s32.totalorder %s134, 2
          %s141 = scalar_select %p140, %s134, 2
          %s142 = smul.addr %s141, 2
          %s143 = smul.addr %s142, 4
          %s144 = scalar_lea.vmem %s0, %s143
          %s145 = smul.u32 2, %s12
          %s146 = ssub.s32 3, %s145
          %p147 = scmp.lt.s32.totalorder %s146, 2
          %s148 = scalar_select %p147, %s146, 2
          %s149 = smul.u32 4, %s148
          %s150 = smul.u32 %s149, 2
        $region28: #{_forward.1} parent=23 // pred_fallthru
          _
      $region24: #{_forward.1} parent=5 // pred_fallthru
        _
      %p151 = scmp.le.s32.totalorder 1, %s12
      %p152 = scmp.lt.s32.totalorder %s12, 3
      %p153 = pnand %p151, %p152
      %p154 = pneg %p153
      // Predicated region
      $region29: #{_forward.1} parent=5 // pred_check
        _
      $region30: #{_forward.1} parent=5 // pred_check_branch
        %156 = sbr.rel (%p153) target = $region32
      $region31: #{_forward.1} parent=5 // pred_region
        %s157 = ssub.s32 %s12, 1
        %s158 = smul.u32 2, %s17
        %s159 = ssub.s32 3, %s158
        %p160 = scmp.lt.s32.totalorder %s159, 2
        %s161 = scalar_select %p160, %s159, 2
        %s162 = smul.u32 4, %s161
        %s163 = smul.u32 %s162, 2
        %p164 = scmp.lt.s32.totalorder %s158, 2
        %s165 = scalar_select %p164, %s158, 2
        %s166 = smul.addr %s165, 2
        %s167 = smul.addr %s166, 4
        %s168 = scalar_lea.vmem %s0, %s167
        %p169 = pneg %p38
        %p170 = pneg %p35
        %p171 = pneg %p59
        %p172 = pneg %p56
        %p173 = pneg %p80
        %p174 = pneg %p77
        %p175 = pneg %p106
        %p176 = pneg %p103
        %s177 = sand.u32 %s93, 1
        %s178 = scalar_lea.sflag [#allocation3], %s177
        %s179 = sand.u32 %s93, 1
        %s180 = smul.addr %s179, 16
        %s181 = scalar_lea.vmem [#allocation2], %s180
        %s182 = smul.u32 2, %s17
        %s183 = ssub.s32 3, %s182
        %p184 = scmp.lt.s32.totalorder %s183, 2
        %s185 = scalar_select %p184, %s183, 2
        %s186 = smul.u32 4, %s185
        %s187 = smul.u32 %s186, 2
        %p188 = scmp.lt.s32.totalorder %s182, 2
        %s189 = scalar_select %p188, %s182, 2
        %s190 = smul.addr %s189, 2
        %s191 = smul.addr %s190, 4
        %s192 = scalar_lea.vmem %s0, %s191
        %s193 = smul.u32 2, %s17
        %s194 = ssub.s32 3, %s193
        %p195 = scmp.lt.s32.totalorder %s194, 2
        %s196 = scalar_select %p195, %s194, 2
        %s197 = smul.u32 4, %s196
        %s198 = smul.u32 %s197, 2
        %s199 = smul.u32 2, %s17
        %s200 = ssub.s32 3, %s199
        %p201 = scmp.lt.s32.totalorder %s200, 2
        %s202 = scalar_select %p201, %s200, 2
        %s203 = smul.u32 8, %s202
        %v204 = vld [vmem:[%s192] sm:$0xff]
        %v205 = vld [vmem:[%s192 + $0x8] sm:$0xff]
        %v206 = vld [vmem:[%s1] sm:$0xf]
        %v207 = vld [vmem:[%s1 + $0x4] sm:$0xf]
        %v208 = vld [vmem:[%s1 + $0x8] sm:$0xf]
        %v209 = vld [vmem:[%s1 + $0xc] sm:$0xf]
        %v210 = vld [vmem:[%s1 + $0x10] sm:$0xf]
        %v211 = vld [vmem:[%s1 + $0x14] sm:$0xf]
        %v212 = vld [vmem:[%s1 + $0x18] sm:$0xf]
        %v213 = vld [vmem:[%s1 + $0x1c] sm:$0xf]
        %v214 = vld [vmem:[%s1 + $0x20] sm:$0xf]
        %v215 = vld [vmem:[%s1 + $0x24] sm:$0xf]
        %v216 = vld [vmem:[%s1 + $0x28] sm:$0xf]
        %v217 = vld [vmem:[%s1 + $0x2c] sm:$0xf]
        %v218 = vld [vmem:[%s1 + $0x30] sm:$0xf]
        %v219 = vld [vmem:[%s1 + $0x34] sm:$0xf]
        %v220 = vld [vmem:[%s1 + $0x38] sm:$0xf]
        %v221 = vld [vmem:[%s1 + $0x3c] sm:$0xf]
        %v222 = vld [vmem:[%s1 + $0x40] sm:$0xf]
        %v223 = vld [vmem:[%s1 + $0x44] sm:$0xf]
        %v224 = vld [vmem:[%s1 + $0x48] sm:$0xf]
        %v225 = vld [vmem:[%s1 + $0x4c] sm:$0xf]
        %v226 = vld [vmem:[%s1 + $0x50] sm:$0xf]
        %v227 = vld [vmem:[%s1 + $0x54] sm:$0xf]
        %v228 = vld [vmem:[%s1 + $0x58] sm:$0xf]
        %v229 = vld [vmem:[%s1 + $0x5c] sm:$0xf]
        %v230 = vld [vmem:[%s1 + $0x60] sm:$0xf]
        %v231 = vld [vmem:[%s1 + $0x64] sm:$0xf]
        %v232 = vld [vmem:[%s1 + $0x68] sm:$0xf]
        %v233 = vld [vmem:[%s1 + $0x6c] sm:$0xf]
        %v234 = vld [vmem:[%s1 + $0x70] sm:$0xf]
        %v235 = vld [vmem:[%s1 + $0x74] sm:$0xf]
        %v236 = vld [vmem:[%s1 + $0x78] sm:$0xf]
        %v237 = vld [vmem:[%s1 + $0x7c] sm:$0xf]
        %v238 = vld [vmem:[%s2] sm:$0x1]
        %v240 = vperm.slane %v238, 0
        %v244 = vunpack.c.l.b16 %v204
        %v245 = vunpack.c.h.b16 %v204
        %v246 = vunpack.c.l.b16 %v205
        %v247 = vunpack.c.h.b16 %v205
        %v248 = vpack.c.b16 %v246, %v244
        %v249 = vpack.c.b16 %v247, %v245
        %v284 = vunpack.c.l.b16 %v206
        %v285 = vunpack.c.l.b16 %v207
        %v286 = vunpack.c.l.b16 %v208
        %v287 = vunpack.c.l.b16 %v209
        %v288 = vunpack.c.l.b16 %v210
        %v289 = vunpack.c.l.b16 %v211
        %v290 = vunpack.c.l.b16 %v212
        %v291 = vunpack.c.l.b16 %v213
        %v292 = vunpack.c.l.b16 %v214
        %v293 = vunpack.c.l.b16 %v215
        %v294 = vunpack.c.l.b16 %v216
        %v295 = vunpack.c.l.b16 %v217
        %v296 = vunpack.c.l.b16 %v218
        %v297 = vunpack.c.l.b16 %v219
        %v298 = vunpack.c.l.b16 %v220
        %v299 = vunpack.c.l.b16 %v221
        %v300 = vunpack.c.l.b16 %v222
        %v301 = vunpack.c.l.b16 %v223
        %v302 = vunpack.c.l.b16 %v224
        %v303 = vunpack.c.l.b16 %v225
        %v304 = vunpack.c.l.b16 %v226
        %v305 = vunpack.c.l.b16 %v227
        %v306 = vunpack.c.l.b16 %v228
        %v307 = vunpack.c.l.b16 %v229
        %v308 = vunpack.c.l.b16 %v230
        %v309 = vunpack.c.l.b16 %v231
        %v310 = vunpack.c.l.b16 %v232
        %v311 = vunpack.c.l.b16 %v233
        %v312 = vunpack.c.l.b16 %v234
        %v313 = vunpack.c.l.b16 %v235
        %v314 = vunpack.c.l.b16 %v236
        %v315 = vunpack.c.l.b16 %v237
        %v316 = vpack.c.b16 %v285, %v284
        %v317 = vpack.c.b16 %v287, %v286
        %v318 = vpack.c.b16 %v289, %v288
        %v319 = vpack.c.b16 %v291, %v290
        %v320 = vpack.c.b16 %v293, %v292
        %v321 = vpack.c.b16 %v295, %v294
        %v322 = vpack.c.b16 %v297, %v296
        %v323 = vpack.c.b16 %v299, %v298
        %v324 = vpack.c.b16 %v301, %v300
        %v325 = vpack.c.b16 %v303, %v302
        %v326 = vpack.c.b16 %v305, %v304
        %v327 = vpack.c.b16 %v307, %v306
        %v328 = vpack.c.b16 %v309, %v308
        %v329 = vpack.c.b16 %v311, %v310
        %v330 = vpack.c.b16 %v313, %v312
        %v331 = vpack.c.b16 %v315, %v314
        %348 = vmatpush.bf16.msra.mxu0 %v323
        %349 = vmatpush.bf16.msra.mxu0 %v322
        %350 = vmatpush.bf16.msra.mxu0 %v321
        %351 = vmatpush.bf16.msra.mxu0 %v320
        %352 = vmatpush.bf16.msra.mxu0 %v319
        %353 = vmatpush.bf16.msra.mxu0 %v318
        %354 = vmatpush.bf16.msra.mxu0 %v317
        %355 = vmatpush.bf16.msra.mxu0 %v316
        %356 = vmatmul.bf16.gmra.mxu0 %v248
        %v357 = vpop.f32.mrf.mxu0
        %v358 = vadd.f32 %v240, %v357
        %v359 = vpop.f32.mrf.mxu0
        %v360 = vadd.f32 %v240, %v359
        %361 = vdwg.mxu0
        %362 = vmatpush.bf16.msra.mxu0 %v331
        %363 = vmatpush.bf16.msra.mxu0 %v330
        %364 = vmatpush.bf16.msra.mxu0 %v329
        %365 = vmatpush.bf16.msra.mxu0 %v328
        %366 = vmatpush.bf16.msra.mxu0 %v327
        %367 = vmatpush.bf16.msra.mxu0 %v326
        %368 = vmatpush.bf16.msra.mxu0 %v325
        %369 = vmatpush.bf16.msra.mxu0 %v324
        %370 = vmatmul.bf16.gmra.mxu0 %v249
        %v371 = vpop.f32.mrf.mxu0
        %v372 = vadd.f32 %v358, %v371
        %v373 = vpop.f32.mrf.mxu0
        %v374 = vadd.f32 %v360, %v373
        %375 = vdwg.mxu0
        %376 = vst [vmem:[%s181] sm:$0xff] %v372
        %377 = vst [vmem:[%s181 + $0x8] sm:$0xff] %v374
        %s378 = sand.u32 %s93, 1
        %s379 = scalar_lea.sflag [#allocation3], %s378
        %s380 = sand.u32 %s93, 1
        %s381 = smul.addr %s380, 16
        %s382 = scalar_lea.vmem [#allocation2], %s381
        // Predicated region
        $region33: #{_forward.1} parent=31 // pred_check
          %p383 = pneg %p103
        $region34: #{_forward.1} parent=31 // pred_check_branch
          %385 = sbr.rel (%p383) target = $region36
        $region35: #{_forward.1} parent=31 // pred_region
          %s386 = smul.u32 2, %s17
          %s387 = ssub.s32 3, %s386
          %p388 = scmp.lt.s32.totalorder %s387, 2
          %s389 = scalar_select %p388, %s387, 2
          %s390 = smul.u32 8, %s389
          %s391 = ssub.s32 16, %s390
          %s392 = sshll.u32 %s391, 4
          %393 = vsyncadd %s379, %s392
          %p394 = scmp.ne.s32.totalorder 0, %s390
          %s395 = smul.addr %s386, 8
          %s396 = scalar_lea.hbm %s3, %s395
          %s397 = smul.u32 8, %s389
          %s398 = sshll.u32 %s382, 4
          %s399 = int_to_ptr.vmem [resolvable:$true] %s398
          %s400 = sshll.u32 %s396, 4
          %s401 = int_to_ptr.hbm [resolvable:$true] %s400
          %s402 = sshll.u32 %s397, 4
          %406 = dma.vmem_to_hbm [thread:$0]  (%p394), %s399, %s402, %s401, %s379, 128, 128, 8
        $region36: #{_forward.1} parent=31 // pred_fallthru
          _
      $region32: #{_forward.1} parent=5 // pred_fallthru
        _
      %p407 = scmp.le.s32.totalorder 2, %s12
      // Predicated region
      $region37: #{_forward.1} parent=5 // pred_check
        %p408 = pneg %p407
      $region38: #{_forward.1} parent=5 // pred_check_branch
        %410 = sbr.rel (%p408) target = $region40
      $region39: #{_forward.1} parent=5 // pred_region
        %s411 = ssub.s32 %s12, 2
        // Predicated region
        $region41: #{_forward.1} parent=39 // pred_check
          %p412 = pneg %p109
        $region42: #{_forward.1} parent=39 // pred_check_branch
          %414 = sbr.rel (%p412) target = $region44
        $region43: #{_forward.1} parent=39 // pred_region
          %s415 = sand.u32 %s94, 1
          %s416 = scalar_lea.sflag [#allocation3], %s415
          %s417 = sand.u32 %s94, 1
          %s418 = smul.addr %s417, 16
          %s419 = scalar_lea.vmem [#allocation2], %s418
          %421 = dma.done %s416, 256
        $region44: #{_forward.1} parent=39 // pred_fallthru
          _
      $region40: #{_forward.1} parent=5 // pred_fallthru
        _
    $region6: #{_forward.1} parent=1 // loop_footer
      %s16 = sadd.s32 1, %s12
    $region7: #{_forward.1} parent=1 // loop_footer_branch
      %11 = sbr.rel target = $region3
    $region8: #{_forward.1} parent=1 // loop_exit
      _
    %422 = vsyncpa [#allocation3], 1
    %s423 = scalar_lea.sflag [#allocation3], 1
    %424 = vsyncpa %s423, 1

</llo_original>
